<compile_context>
chip_gen: v7x
topology: tpu7x:2x2x1
jax: 0.10.0
libtpu: 0.0.40
codegen_flags: <defaults>
</compile_context>

<pallas_src>
import functools

import jax
import jax.numpy as jnp
from jax.experimental import pallas as pl
from jax.experimental.pallas import tpu as pltpu


# ---------------------------------------------------------------------------
# Pallas kernel: activation + end_norm fused, one (TR, C) row tile per step
# ---------------------------------------------------------------------------
def _eigen_kernel(x_ref, o_ref, *, acti_name, end_norm):
    # Rows are independent: any undefined rows in the partial last tile stay
    # confined to themselves and are discarded on write by Pallas.
    x = x_ref[...].astype(jnp.float32)          # (TR, C), f32 in-register

    # --- activation_set -----------------------------------------------------
    if acti_name == "relu":
        x = jnp.maximum(x, 0.0)
    elif acti_name == "sigmoid":
        x = jax.nn.sigmoid(x)
    elif acti_name == "none":
        pass
    else:
        raise ValueError("acti_name error")

    # --- end_norm_set -------------------------------------------------------
    def linear_norm(v):
        s = jnp.sum(v, axis=-1, keepdims=True)          # (TR, 1)
        s = jnp.where(s == 0.0, 1.0, s)
        inv = pl.reciprocal(s, approx=False)             # one EUP recip / row
        return v * inv                                   # single broadcast mul

    if end_norm == "softmax":
        m = jnp.max(x, axis=-1, keepdims=True)
        e = jnp.exp(x - m)
        y = e * pl.reciprocal(jnp.sum(e, axis=-1, keepdims=True), approx=False)
    elif end_norm == "linear":
        y = linear_norm(x)
    elif end_norm == "relu":
        y = linear_norm(jnp.maximum(x, 0.0))
    elif end_norm == "mix":
        # exp(x) for x>=0 ; (x+1) for -1<=x<0 ; 0 for x<-1  -> linear norm
        v = jnp.where(x >= 0.0, jnp.exp(x),
                      jnp.where(x >= -1.0, x + 1.0, 0.0))
        y = linear_norm(v)
    elif end_norm == "none":
        y = x
    else:
        raise ValueError("end_norm error")

    o_ref[...] = y.astype(o_ref.dtype)


# ---------------------------------------------------------------------------
# Hardware-aware helpers
# ---------------------------------------------------------------------------
def _vmem_capacity_bytes():
    try:
        return int(pltpu.get_tpu_info().vmem_capacity_bytes)
    except Exception:
        return 128 * 1024 * 1024                 # v5e/v6e default


# Prefer an explicit cross-TensorCore split on multi-core chips (v7x); fall
# back to "parallel" (compile-safe everywhere, megacore-friendly) if the
# core-parallel lowering is rejected on this chip/jax version.
_CORE_PARALLEL_STATE = {"ok": None}


def _semantics_candidates():
    core_parallel = getattr(pltpu, "CORE_PARALLEL", None)
    if core_parallel is None or _CORE_PARALLEL_STATE["ok"] is False:
        return ("parallel",)
    return (core_parallel, "parallel")


# ---------------------------------------------------------------------------
# Wrapper: (A, B, C) -> (rows, C) row-tiled streaming kernel (no pads, no slices)
# ---------------------------------------------------------------------------
def eigen_nn_forward(x, *, acti_name="relu", end_norm="mix",
                     target_tile_bytes=None):
    """Apply EigenNN's activation + end_norm along the last axis of (A, B, C)."""
    A, B, C = x.shape
    rows = A * B
    x2 = x.reshape(rows, C)                      # metadata-only: C is contiguous

    # VMEM lane footprint of one row (Mosaic pads lanes to 128 internally);
    # used only for tile sizing — HBM stays un-padded.
    c_pad = ((C + 127) // 128) * 128
    vmem_cap = _vmem_capacity_bytes()
    small_vmem = vmem_cap <= 64 * 1024 * 1024    # v7x-class (64 MiB / TC)
    if target_tile_bytes is None:
        # f32-tile budget; total VMEM ≈ 2x in + 2x out (dtype) + ~3 f32 temps.
        target_tile_bytes = (2 if small_vmem else 6) * 1024 * 1024
    vmem_limit = (40 if small_vmem else 64) * 1024 * 1024

    tr = target_tile_bytes // (c_pad * 4)        # rows per tile at f32 footprint
    tr = max(8, min(16384, tr))
    tr = (tr // 8) * 8                           # sublane-aligned
    if tr >= rows:
        tr = rows                                # single full-dim block is legal
    grid = pl.cdiv(rows, tr)                     # partial last tile handled by Pallas

    kernel = functools.partial(_eigen_kernel, acti_name=acti_name,
                               end_norm=end_norm)

    last_err = None
    for sem in _semantics_candidates():
        try:
            out = pl.pallas_call(
                kernel,
                out_shape=jax.ShapeDtypeStruct((rows, C), x.dtype),
                grid_spec=pltpu.PrefetchScalarGridSpec(
                    num_scalar_prefetch=0,
                    grid=(grid,),
                    in_specs=[pl.BlockSpec((tr, C), lambda i: (i, 0))],
                    out_specs=pl.BlockSpec((tr, C), lambda i: (i, 0)),
                ),
                compiler_params=pltpu.CompilerParams(
                    dimension_semantics=(sem,),
                    vmem_limit_bytes=vmem_limit),
            )(x2)
            if sem != "parallel":
                _CORE_PARALLEL_STATE["ok"] = True
            return out.reshape(A, B, C)
        except Exception as e:                   # noqa: BLE001 — fall back safely
            if sem != "parallel":
                _CORE_PARALLEL_STATE["ok"] = False
            last_err = e
    raise last_err


# ---------------------------------------------------------------------------
# Pure-JAX reference (mirrors the PyTorch code 1:1) for correctness checking
# ---------------------------------------------------------------------------
def _ref_forward(x, *, acti_name, end_norm):
    x = x.astype(jnp.float32)
    if acti_name == "relu":
        x = jnp.maximum(x, 0.0)
    elif acti_name == "sigmoid":
        x = jax.nn.sigmoid(x)

    def norm(v):
        s = jnp.sum(v, axis=-1, keepdims=True)
        s = jnp.where(s == 0.0, jnp.ones_like(s), s)
        return v / s

    if end_norm == "softmax":
        return jax.nn.softmax(x, axis=-1)
    if end_norm == "linear":
        return norm(x)
    if end_norm == "relu":
        return norm(jnp.maximum(x, 0.0))
    if end_norm == "mix":
        v = (jnp.exp(x) * (x >= 0.0)
             + (x + 1.0) * ((x < 0.0) & (x >= -1.0)))
        return norm(v)
    return x


# TODO(synk): EigenNN.forward / count_loss / test_loss_* are `pass` in the
# reference module (abstract base); only activation + end_norm are concrete.

if __name__ == "__main__":
    key = jax.random.PRNGKey(0)
    ok = True

    def _check(out, ref, tag, atol=1e-5, rtol=1e-5):
        global ok
        if not jnp.allclose(out, ref, atol=atol, rtol=rtol):
            ok = False
            err = float(jnp.max(jnp.abs(out - ref)))
            print(f"MISMATCH {tag} max_err={err}")

    # small shapes: lane-aligned C, non-aligned C, and non-aligned rows+lanes
    shapes = [(2, 8, 128), (2, 8, 96), (3, 5, 200)]
    for idx, (A, B, C) in enumerate(shapes):
        x = jax.random.normal(jax.random.fold_in(key, idx), (A, B, C),
                              dtype=jnp.float32)
        for acti in ("relu", "sigmoid"):
            for en in ("softmax", "linear", "relu", "mix", "none"):
                out = jax.block_until_ready(
                    eigen_nn_forward(x, acti_name=acti, end_norm=en))
                ref = _ref_forward(x, acti_name=acti, end_norm=en)
                _check(out, ref, f"shape={(A, B, C)} acti={acti} end_norm={en}")

    # exercise the partial final row tile (rows % TR != 0, C % 128 != 0) by
    # forcing a tiny tile budget -> TR=8 over rows=15
    xp = jax.random.normal(jax.random.fold_in(key, 99), (3, 5, 200),
                           dtype=jnp.float32)
    for acti in ("relu", "sigmoid"):
        for en in ("softmax", "linear", "relu", "mix", "none"):
            out = jax.block_until_ready(
                eigen_nn_forward(xp, acti_name=acti, end_norm=en,
                                 target_tile_bytes=8 * 1024))
            ref = _ref_forward(xp, acti_name=acti, end_norm=en)
            _check(out, ref, f"partial-tile acti={acti} end_norm={en}")

    # bf16 HBM I/O end-to-end (memory-bound op: halves bytes/element); kernel
    # still computes in f32 in-register, so only output rounding error remains
    xb = jax.random.normal(jax.random.fold_in(key, 7), (2, 8, 128),
                           dtype=jnp.float32).astype(jnp.bfloat16)
    outb = jax.block_until_ready(
        eigen_nn_forward(xb, acti_name="relu", end_norm="linear"))
    refb = _ref_forward(xb.astype(jnp.float32), acti_name="relu",
                        end_norm="linear")
    _check(outb.astype(jnp.float32), refb, "bf16 relu/linear",
           atol=5e-2, rtol=5e-2)

    if ok:
        print("KERNEL_OK")
</pallas_src>

<mosaic_0001>
module attributes {stable_mosaic.version = 11 : i64} {
  func.func @_eigen_kernel(%arg0: i32, %arg1: memref<16x128xf32, #tpu.memory_space<vmem>>, %arg2: memref<16x128xf32, #tpu.memory_space<vmem>>) attributes {dimension_semantics = [#tpu.dimension_semantics<core_parallel>], iteration_bounds = array<i64: 1>, scalar_prefetch = 0 : i64, scratch_operands = 0 : i64, tpu.core_type = #tpu.core_type<tc>, window_params = [{transform_indices = @transform_0, window_bounds = array<i64: 16, 128>}, {transform_indices = @transform_1, window_bounds = array<i64: 16, 128>}]} {
    %c0 = arith.constant 0 : index
    %c0_0 = arith.constant 0 : index
    %0 = vector.load %arg1[%c0, %c0_0] : memref<16x128xf32, #tpu.memory_space<vmem>>, vector<16x128xf32>
    %cst = arith.constant 0.000000e+00 : f32
    %1 = vector.broadcast %cst : f32 to vector<16x128xf32>
    %2 = arith.maximumf %0, %1 : vector<16x128xf32>
    %cst_1 = arith.constant dense<0xFF800000> : vector<16xf32>
    %3 = vector.multi_reduction <maximumf>, %2, %cst_1 [1] : vector<16x128xf32> to vector<16xf32>
    %4 = vector.shape_cast %3 : vector<16xf32> to vector<16x1xf32>
    %5 = vector.broadcast %4 : vector<16x1xf32> to vector<16x128xf32>
    %6 = arith.subf %2, %5 : vector<16x128xf32>
    %7 = math.exp %6 : vector<16x128xf32>
    %cst_2 = arith.constant dense<0.000000e+00> : vector<16xf32>
    %8 = vector.multi_reduction <add>, %7, %cst_2 [1] : vector<16x128xf32> to vector<16xf32>
    %9 = vector.shape_cast %8 : vector<16xf32> to vector<16x1xf32>
    %10 = tpu.reciprocal %9 : vector<16x1xf32> -> vector<16x1xf32>
    %11 = vector.broadcast %10 : vector<16x1xf32> to vector<16x128xf32>
    %12 = arith.mulf %7, %11 : vector<16x128xf32>
    %c0_3 = arith.constant 0 : index
    %c0_4 = arith.constant 0 : index
    %13 = vector.load %arg2[%c0_3, %c0_4] : memref<16x128xf32, #tpu.memory_space<vmem>>, vector<16x128xf32>
    tpu.vector_store %arg2[%c0_3, %c0_4], %12 {strides = array<i32>} : memref<16x128xf32, #tpu.memory_space<vmem>>, vector<16x128xf32>,
    return
  }
  func.func @transform_0(%arg0: i32) -> (i32, i32) {
    %c0_i32 = arith.constant 0 : i32
    %c0_i32_0 = arith.constant 0 : i32
    return %arg0, %c0_i32 : i32, i32
  }
  func.func @transform_1(%arg0: i32) -> (i32, i32) {
    %c0_i32 = arith.constant 0 : i32
    %c0_i32_0 = arith.constant 0 : i32
    return %arg0, %c0_i32 : i32, i32
  }
}

module attributes {stable_mosaic.version = 11 : i64} {
  func.func @_eigen_kernel(%arg0: i32, %arg1: memref<16x128xf32, #tpu.memory_space<vmem>>, %arg2: memref<16x128xf32, #tpu.memory_space<vmem>>) attributes {dimension_semantics = [#tpu.dimension_semantics<parallel>], iteration_bounds = array<i64: 1>, scalar_prefetch = 0 : i64, scratch_operands = 0 : i64, tpu.core_type = #tpu.core_type<tc>, window_params = [{transform_indices = @transform_0, window_bounds = array<i64: 16, 128>}, {transform_indices = @transform_1, window_bounds = array<i64: 16, 128>}]} {
    %c0 = arith.constant 0 : index
    %c0_0 = arith.constant 0 : index
    %0 = vector.load %arg1[%c0, %c0_0] : memref<16x128xf32, #tpu.memory_space<vmem>>, vector<16x128xf32>
    %cst = arith.constant 0.000000e+00 : f32
    %1 = vector.broadcast %cst : f32 to vector<16x128xf32>
    %2 = arith.maximumf %0, %1 : vector<16x128xf32>
    %cst_1 = arith.constant dense<0xFF800000> : vector<16xf32>
    %3 = vector.multi_reduction <maximumf>, %2, %cst_1 [1] : vector<16x128xf32> to vector<16xf32>
    %4 = vector.shape_cast %3 : vector<16xf32> to vector<16x1xf32>
    %5 = vector.broadcast %4 : vector<16x1xf32> to vector<16x128xf32>
    %6 = arith.subf %2, %5 : vector<16x128xf32>
    %7 = math.exp %6 : vector<16x128xf32>
    %cst_2 = arith.constant dense<0.000000e+00> : vector<16xf32>
    %8 = vector.multi_reduction <add>, %7, %cst_2 [1] : vector<16x128xf32> to vector<16xf32>
    %9 = vector.shape_cast %8 : vector<16xf32> to vector<16x1xf32>
    %10 = tpu.reciprocal %9 : vector<16x1xf32> -> vector<16x1xf32>
    %11 = vector.broadcast %10 : vector<16x1xf32> to vector<16x128xf32>
    %12 = arith.mulf %7, %11 : vector<16x128xf32>
    %c0_3 = arith.constant 0 : index
    %c0_4 = arith.constant 0 : index
    %13 = vector.load %arg2[%c0_3, %c0_4] : memref<16x128xf32, #tpu.memory_space<vmem>>, vector<16x128xf32>
    tpu.vector_store %arg2[%c0_3, %c0_4], %12 {strides = array<i32>} : memref<16x128xf32, #tpu.memory_space<vmem>>, vector<16x128xf32>,
    return
  }
  func.func @transform_0(%arg0: i32) -> (i32, i32) {
    %c0_i32 = arith.constant 0 : i32
    %c0_i32_0 = arith.constant 0 : i32
    return %arg0, %c0_i32 : i32, i32
  }
  func.func @transform_1(%arg0: i32) -> (i32, i32) {
    %c0_i32 = arith.constant 0 : i32
    %c0_i32_0 = arith.constant 0 : i32
    return %arg0, %c0_i32 : i32, i32
  }
}

</mosaic_0001>

<llo_original>
// kernel: tpu_custom_call.1
$region0: #{tpu_custom_call.1}
  #allocation0 [shape = 'u32[]', space=smem, size = 0x4, offset = 0x4, fixed_abs, tag = 'smem constant byte address 0x4 - core index']
  #allocation1 [shape = 'u32[144,128]{1,0:T(1,128)}', space=vmem, size = 0x12000, scoped, tag = 'internal scratch']
  %s0 = inlined_call_operand.hbm [shape: f32[16,128], index: 0, kind: input, shape index: {}]
  %s1 = inlined_call_operand.hbm [shape: f32[16,128], index: 1, kind: output, shape index: {}]
  %s2 = sld [smem:[#allocation0]]
  $region18: #{tpu_custom_call.1} parent=0
    _
  %s4 = ssub.s32 1, %s2
  %s5 = scalar_select 0, %s4, %s2
  $region1: #{tpu_custom_call.1} parent=0
    #allocation2 [shape = 'u8[8192]{0}', space=vmem, size = 0x2000, scoped, tag = 'input window, operand 0, single buffered']
    #allocation3 [shape = 's32[1]{0}', space=sflag, size = 0x4, scoped, tag = 'scoped memory for tpu_custom_call.1']
    #allocation4 [shape = 's32[1]{0}', space=sflag, size = 0x4, scoped, tag = 'scoped memory for tpu_custom_call.1']
    #allocation5 [shape = 'u8[8192]{0}', space=vmem, size = 0x2000, scoped, tag = 'output window, operand 0, single buffered']
    %6 = vsyncpa [#allocation3], 0
    %7 = vsyncpa [#allocation4], 0
    // Predicated region
    $region2: #{tpu_custom_call.1} parent=1 // pred_check
      _
    $region3: #{tpu_custom_call.1} parent=1 // pred_check_branch
      %9 = sbr.rel (0) target = $region5
    $region4: #{tpu_custom_call.1} parent=1 // pred_region
      %s10 = smul.u32 2, %s5
      %s12 = ssub.s32 256, 256
      %13 = vsyncadd [#allocation3], %s12
      %s14 = smul.addr %s10, 128
      %s15 = scalar_lea.hbm %s0, %s14
      %s16 = sshll.u32 [#allocation2], 4
      %s17 = int_to_ptr.vmem [resolvable:$true] %s16
      %22 = dma.hbm_to_vmem [thread:$0]  %s15, 256, %s17, [#allocation3], 128, 128, 8
    $region5: #{tpu_custom_call.1} parent=1 // pred_fallthru
      _
    // Predicated region
    $region6: #{tpu_custom_call.1} parent=1 // pred_check
      _
    $region7: #{tpu_custom_call.1} parent=1 // pred_check_branch
      %24 = sbr.rel (0) target = $region9
    $region8: #{tpu_custom_call.1} parent=1 // pred_region
      %25 = dma.done [#allocation3], 256
    $region9: #{tpu_custom_call.1} parent=1 // pred_fallthru
      _
    %s26 = smul.u32 2, %s5
    %s27 = smul.u32 2, %s5
    %v28 = vld [vmem:[#allocation2] sm:$0xff]
    %v29 = vld [vmem:[#allocation2 + $0x8] sm:$0xff]
    %v30 = vmax.f32 %v28, 0.0
    %v31 = vmax.f32 %v29, 0.0
    %32 = vmax.xlane.f32.xlu0 %v30
    %v33 = vpop.xlane.xlu0 %32
    %34 = vmax.xlane.f32.xlu0 %v31
    %v35 = vpop.xlane.xlu0 %34
    %v36 = vsub.f32 %v30, %v33
    %v37 = vsub.f32 %v31, %v35
    %v38 = vmul.f32 %v36, 1.442695
    %v39 = vpow.pop %v38
    %v40 = vmul.f32 %v37, 1.442695
    %v41 = vpow.pop %v40
    %42 = vadd.xlane.f32.xlu0 %v39
    %v43 = vpop.xlane.xlu0 %42
    %44 = vadd.xlane.f32.xlu0 %v41
    %v45 = vpop.xlane.xlu0 %44
    %v46 = vrcp.pop %v43
    %v47 = vrcp.pop %v45
    %v48 = vmul.f32 %v39, %v46
    %v49 = vmul.f32 %v41, %v47
    %50 = vst [vmem:[#allocation5] sm:$0xff] %v48
    %51 = vst [vmem:[#allocation5 + $0x8] sm:$0xff] %v49
    // Predicated region
    $region10: #{tpu_custom_call.1} parent=1 // pred_check
      _
    $region11: #{tpu_custom_call.1} parent=1 // pred_check_branch
      %53 = sbr.rel (0) target = $region13
    $region12: #{tpu_custom_call.1} parent=1 // pred_region
      %s54 = smul.u32 2, %s5
      %s56 = ssub.s32 256, 256
      %57 = vsyncadd [#allocation4], %s56
      %s58 = smul.addr %s54, 128
      %s59 = scalar_lea.hbm %s1, %s58
      %s60 = sshll.u32 [#allocation5], 4
      %s61 = int_to_ptr.vmem [resolvable:$true] %s60
      %66 = dma.vmem_to_hbm [thread:$0]  %s61, 256, %s59, [#allocation4], 128, 128, 8
    $region13: #{tpu_custom_call.1} parent=1 // pred_fallthru
      _
    // Predicated region
    $region14: #{tpu_custom_call.1} parent=1 // pred_check
      _
    $region15: #{tpu_custom_call.1} parent=1 // pred_check_branch
      %68 = sbr.rel (0) target = $region17
    $region16: #{tpu_custom_call.1} parent=1 // pred_region
      %69 = dma.done [#allocation4], 256
    $region17: #{tpu_custom_call.1} parent=1 // pred_fallthru
      _
    %70 = vsyncpa [#allocation3], 1
    %71 = vsyncpa [#allocation4], 1

// kernel: tpu_custom_call.1
$region0: #{tpu_custom_call.1}
  #allocation0 [shape = 'u32[]', space=smem, size = 0x4, offset = 0x4, fixed_abs, tag = 'smem constant byte address 0x4 - core index']
  #allocation1 [shape = 'u32[144,128]{1,0:T(1,128)}', space=vmem, size = 0x12000, scoped, tag = 'internal scratch']
  %s0 = inlined_call_operand.hbm [shape: f32[16,128], index: 0, kind: input, shape index: {}]
  %s1 = inlined_call_operand.hbm [shape: f32[16,128], index: 1, kind: output, shape index: {}]
  %s2 = sld [smem:[#allocation0]]
  $region18: #{tpu_custom_call.1} parent=0
    _
  %s4 = ssub.s32 1, %s2
  %s5 = scalar_select 0, %s4, %s2
  $region1: #{tpu_custom_call.1} parent=0
    #allocation2 [shape = 'u8[8192]{0}', space=vmem, size = 0x2000, scoped, tag = 'input window, operand 0, single buffered']
    #allocation3 [shape = 's32[1]{0}', space=sflag, size = 0x4, scoped, tag = 'scoped memory for tpu_custom_call.1']
    #allocation4 [shape = 's32[1]{0}', space=sflag, size = 0x4, scoped, tag = 'scoped memory for tpu_custom_call.1']
    #allocation5 [shape = 'u8[8192]{0}', space=vmem, size = 0x2000, scoped, tag = 'output window, operand 0, single buffered']
    %6 = vsyncpa [#allocation3], 0
    %7 = vsyncpa [#allocation4], 0
    // Predicated region
    $region2: #{tpu_custom_call.1} parent=1 // pred_check
      _
    $region3: #{tpu_custom_call.1} parent=1 // pred_check_branch
      %9 = sbr.rel (0) target = $region5
    $region4: #{tpu_custom_call.1} parent=1 // pred_region
      %s11 = ssub.s32 256, 256
      %12 = vsyncadd [#allocation3], %s11
      %s13 = sshll.u32 [#allocation2], 4
      %s14 = int_to_ptr.vmem [resolvable:$true] %s13
      %19 = dma.hbm_to_vmem [thread:$0]  %s0, 256, %s14, [#allocation3], 128, 128, 8
    $region5: #{tpu_custom_call.1} parent=1 // pred_fallthru
      _
    // Predicated region
    $region6: #{tpu_custom_call.1} parent=1 // pred_check
      _
    $region7: #{tpu_custom_call.1} parent=1 // pred_check_branch
      %21 = sbr.rel (0) target = $region9
    $region8: #{tpu_custom_call.1} parent=1 // pred_region
      %22 = dma.done [#allocation3], 256
    $region9: #{tpu_custom_call.1} parent=1 // pred_fallthru
      _
    %v23 = vld [vmem:[#allocation2] sm:$0xff]
    %v24 = vld [vmem:[#allocation2 + $0x8] sm:$0xff]
    %v25 = vmax.f32 %v23, 0.0
    %v26 = vmax.f32 %v24, 0.0
    %27 = vmax.xlane.f32.xlu0 %v25
    %v28 = vpop.xlane.xlu0 %27
    %29 = vmax.xlane.f32.xlu0 %v26
    %v30 = vpop.xlane.xlu0 %29
    %v31 = vsub.f32 %v25, %v28
    %v32 = vsub.f32 %v26, %v30
    %v33 = vmul.f32 %v31, 1.442695
    %v34 = vpow.pop %v33
    %v35 = vmul.f32 %v32, 1.442695
    %v36 = vpow.pop %v35
    %37 = vadd.xlane.f32.xlu0 %v34
    %v38 = vpop.xlane.xlu0 %37
    %39 = vadd.xlane.f32.xlu0 %v36
    %v40 = vpop.xlane.xlu0 %39
    %v41 = vrcp.pop %v38
    %v42 = vrcp.pop %v40
    %v43 = vmul.f32 %v34, %v41
    %v44 = vmul.f32 %v36, %v42
    %45 = vst [vmem:[#allocation5] sm:$0xff] %v43
    %46 = vst [vmem:[#allocation5 + $0x8] sm:$0xff] %v44
    // Predicated region
    $region10: #{tpu_custom_call.1} parent=1 // pred_check
      _
    $region11: #{tpu_custom_call.1} parent=1 // pred_check_branch
      %48 = sbr.rel (0) target = $region13
    $region12: #{tpu_custom_call.1} parent=1 // pred_region
      %s50 = ssub.s32 256, 256
      %51 = vsyncadd [#allocation4], %s50
      %s52 = sshll.u32 [#allocation5], 4
      %s53 = int_to_ptr.vmem [resolvable:$true] %s52
      %58 = dma.vmem_to_hbm [thread:$0]  %s53, 256, %s1, [#allocation4], 128, 128, 8
    $region13: #{tpu_custom_call.1} parent=1 // pred_fallthru
      _
    // Predicated region
    $region14: #{tpu_custom_call.1} parent=1 // pred_check
      _
    $region15: #{tpu_custom_call.1} parent=1 // pred_check_branch
      %60 = sbr.rel (0) target = $region17
    $region16: #{tpu_custom_call.1} parent=1 // pred_region
      %61 = dma.done [#allocation4], 256
    $region17: #{tpu_custom_call.1} parent=1 // pred_fallthru
      _
    %62 = vsyncpa [#allocation3], 1
    %63 = vsyncpa [#allocation4], 1

</llo_original>
